<compile_context>
chip_gen: v7x
topology: tpu7x:2x2x1
jax: 0.10.0
libtpu: 0.0.40
codegen_flags: <defaults>
</compile_context>

<pallas_src>
import jax
import jax.numpy as jnp
from jax.experimental import pallas as pl
from jax.experimental.pallas import tpu as pltpu


def _linear_classifier_kernel(x_ref, w_ref, b_ref, o_ref):
    """One (batch b, pixel-tile t) grid step.

    x_ref: (1, TM, C)  embeddings tile (input dtype)
    w_ref: (L, C)      classifier weight (compute dtype, e.g. bf16)
    b_ref: (L, 1)      bias (f32)
    o_ref: (1, L, TM)  output tile, lane-dense along the pixel axis
    """
    x = x_ref[0].astype(w_ref.dtype)          # no-op if embeddings already bf16
    # (L, C) x (TM, C) contracting C -> (L, TM), f32 accumulation on the MXU.
    # This is the A.B^T (transpose_rhs) form that flash-attention QK^T uses,
    # and it keeps the output pixel axis lane-dense for unmasked stores.
    # TODO(synk): on v5e at large L, verify in the bundle dump that no
    # per-step XLU transpose of the x tile is emitted; if it is, pre-transpose
    # w to (C, L) in the wrapper and transpose the small (TM, L) accumulator
    # in-kernel instead.
    acc = jax.lax.dot_general(
        w_ref[...], x,
        dimension_numbers=(((1,), (1,)), ((), ())),
        preferred_element_type=jnp.float32)
    o_ref[0] = (acc + b_ref[...]).astype(o_ref.dtype)   # (L,1) bias broadcast


def _round_up(x, m):
    return ((x + m - 1) // m) * m


def _vmem_capacity_bytes():
    try:
        return int(pltpu.get_tpu_info().vmem_capacity_bytes)
    except Exception:
        return 64 << 20   # conservative default: v7x per-TensorCore VMEM


def _resident_spec(block_shape, index_map):
    """BlockSpec for a grid-invariant operand: single-buffer it.

    The index_map is constant, so the block is fetched once; a second buffer
    would be pure VMEM waste (~3 MiB for a 1000x1536 bf16 weight)."""
    try:
        return pl.BlockSpec(block_shape, index_map, pipeline_mode=pl.Buffered(1))
    except (AttributeError, TypeError):      # older jax without pipeline_mode
        return pl.BlockSpec(block_shape, index_map)


def _pick_pixel_tile(s, batch, tm_cap, fits_vmem, min_steps=8):
    """Pick the pixel tile TM (rows per grid step).

    Priorities: (1) fit the VMEM budget, (2) little padding waste in the
    trailing tile, (3) enough grid steps for megacore sharding + DMA/compute
    overlap, (4) tiles >= 512 rows to amortize the ~0.35us per-step overhead,
    then less waste, then bigger.
    """
    if s <= 128:
        return s                         # tiny: full extent (always legal)
    t_max = min(tm_cap, (s // 128) * 128)
    best, best_key = 128, None
    for t in range(128, t_max + 1, 128):
        if not fits_vmem(t):
            continue
        n_tiles = -(-s // t)
        eff = s / (n_tiles * t)          # fraction of issued rows that are real
        key = (eff >= 0.85, batch * n_tiles >= min_steps, min(t, 512), eff, t)
        if best_key is None or key > best_key:
            best, best_key = t, key
    return best


def linear_classifier_forward(embeddings, weight, bias,
                              compute_dtype=jnp.bfloat16,
                              out_dtype=None):
    """
    embeddings: (B, S, C)      (torch: batch, seq, hidden)
    weight:     (L, C, 1, 1)   (torch Conv2d weight layout)
    bias:       (L,)
    returns:    (B, L, H, W), H = W = int(sqrt(S)), matching the torch module.

    Note: MXU operands are bf16 (f32 accumulation), so logits differ from an
    f32 reference at the ~1e-2 relative level.  Pass bf16 embeddings /
    out_dtype=jnp.bfloat16 to halve HBM traffic on mem-bound v6e/v7x.
    """
    B, S, C = embeddings.shape
    H = W = int(S ** 0.5)
    if H * W != S:
        # Same silent assumption as the PyTorch module: S == H * W.
        # TODO(synk): handle a leading CLS token (S = 1 + H*W) if present upstream.
        raise ValueError(f"seq_length {S} is not a perfect square")
    L = weight.shape[0]

    out_dtype = embeddings.dtype if out_dtype is None else out_dtype
    w = weight.reshape(L, C).astype(compute_dtype)      # (L, C)
    b = bias.reshape(L, 1).astype(jnp.float32)          # (L, 1)

    x_bytes = jnp.dtype(embeddings.dtype).itemsize
    w_bytes = jnp.dtype(w.dtype).itemsize
    o_bytes = jnp.dtype(out_dtype).itemsize

    capacity = _vmem_capacity_bytes()
    budget = (capacity * 4) // 5                 # ~80% of physical VMEM
    headroom = 6 << 20                           # Mosaic internal scratch etc.
    tm_cap = 2048 if capacity >= (100 << 20) else 1024   # v5e/v6e vs v7x

    def footprint(t):
        return (2 * t * C * x_bytes              # embeddings tile, double-buffered
                + t * C * w_bytes                # in-kernel bf16 cast of the tile
                + 2 * L * t * o_bytes            # output tile, double-buffered
                + L * t * 4                      # f32 accumulator temporary
                + L * C * w_bytes                # weight, single-buffered
                + _round_up(L, 8) * 128 * 4)     # bias, single-buffered (lane-padded)

    TM = _pick_pixel_tile(S, B, tm_cap,
                          lambda t: footprint(t) + headroom <= budget)
    grid = (B, pl.cdiv(S, TM))

    # Declared limit always covers the true working set (never clamped below it).
    vmem_limit = int(min(budget, max(footprint(TM) + headroom, 32 << 20)))

    cost = pl.CostEstimate(
        flops=2 * B * S * C * L,
        transcendentals=0,
        bytes_accessed=(B * S * C * x_bytes + L * C * w_bytes + L * 4
                        + B * L * S * o_bytes),
    )

    out = pl.pallas_call(
        _linear_classifier_kernel,
        out_shape=jax.ShapeDtypeStruct((B, L, S), out_dtype),
        grid_spec=pltpu.PrefetchScalarGridSpec(
            num_scalar_prefetch=0,
            grid=grid,
            in_specs=[
                pl.BlockSpec((1, TM, C), lambda bi, ti: (bi, ti, 0)),
                _resident_spec((L, C), lambda bi, ti: (0, 0)),
                _resident_spec((L, 1), lambda bi, ti: (0, 0)),
            ],
            out_specs=pl.BlockSpec((1, L, TM), lambda bi, ti: (bi, 0, ti)),
        ),
        compiler_params=pltpu.CompilerParams(
            dimension_semantics=("parallel", "parallel"),
            vmem_limit_bytes=vmem_limit),
        cost_estimate=cost,
    )(embeddings, w, b)

    # (B, L, S) -> (B, L, H, W): pure reshape, no transpose / HBM round-trip.
    return out.reshape(B, L, H, W)


if __name__ == "__main__":
    key = jax.random.PRNGKey(0)

    def run_case(B, S, C, L, keys):
        k_x, k_w, k_b = keys
        embeddings = jax.random.normal(k_x, (B, S, C), dtype=jnp.float32)
        # Deterministic synthetic params (torch Conv2d shapes: (L, C, 1, 1), (L,)).
        weight = jax.random.normal(k_w, (L, C, 1, 1), dtype=jnp.float32) * 0.05
        bias = jax.random.normal(k_b, (L,), dtype=jnp.float32) * 0.05

        y = linear_classifier_forward(embeddings, weight, bias)
        jax.block_until_ready(y)

        H = W = int(S ** 0.5)
        ref = (embeddings.reshape(B, H, W, C) @ weight.reshape(L, C).T
               + bias).transpose(0, 3, 1, 2)
        assert y.shape == (B, L, H, W), y.shape
        # bf16 matmul operands with f32 accumulation -> slightly loose tolerance.
        err = float(jnp.max(jnp.abs(y - ref)))
        assert jnp.allclose(y, ref, atol=2e-2, rtol=2e-2), err

    ks = jax.random.split(key, 6)
    # Small shapes consistent with the module's forward (seq must be a square).
    run_case(2, 16, 32, 1, ks[:3])       # batch=2, seq=16 (H=W=4), C=32, L=1
    # Non-128-multiple pixel count (13^2 = 169) exercises the tiled path with a
    # masked trailing tile -- the same path real DINOv2 grids (37^2, 73^2) hit.
    run_case(2, 169, 32, 3, ks[3:])

    print("KERNEL_OK")
</pallas_src>

<mosaic_0001>
module attributes {stable_mosaic.version = 11 : i64} {
  func.func @_linear_classifier_kernel(%arg0: i32, %arg1: i32, %arg2: memref<1x16x32xf32, #tpu.memory_space<vmem>>, %arg3: memref<1x32xbf16, #tpu.memory_space<vmem>>, %arg4: memref<1x1xf32, #tpu.memory_space<vmem>>, %arg5: memref<1x1x16xf32, #tpu.memory_space<vmem>>) attributes {dimension_semantics = [#tpu.dimension_semantics<parallel>, #tpu.dimension_semantics<parallel>], iteration_bounds = array<i64: 2, 1>, scalar_prefetch = 0 : i64, scratch_operands = 0 : i64, tpu.core_type = #tpu.core_type<tc>, window_params = [{transform_indices = @transform_0, window_bounds = array<i64: 1, 16, 32>}, {pipeline_mode = #tpu.pipeline_mode<synchronous>, transform_indices = @transform_1, window_bounds = array<i64: 1, 32>}, {pipeline_mode = #tpu.pipeline_mode<synchronous>, transform_indices = @transform_2, window_bounds = array<i64: 1, 1>}, {transform_indices = @transform_3, window_bounds = array<i64: 1, 1, 16>}]} {
    %c0 = arith.constant 0 : index
    %c0_0 = arith.constant 0 : index
    %c0_1 = arith.constant 0 : index
    %0 = vector.load %arg2[%c0, %c0_0, %c0_1] : memref<1x16x32xf32, #tpu.memory_space<vmem>>, vector<1x16x32xf32>
    %1 = vector.shape_cast %0 : vector<1x16x32xf32> to vector<16x32xf32>
    %2 = arith.truncf %1 : vector<16x32xf32> to vector<16x32xbf16>
    %c0_2 = arith.constant 0 : index
    %c0_3 = arith.constant 0 : index
    %3 = vector.load %arg3[%c0_2, %c0_3] : memref<1x32xbf16, #tpu.memory_space<vmem>>, vector<1x32xbf16>
    %cst = arith.constant dense<0.000000e+00> : vector<1x16xf32>
    %4 = tpu.matmul %3, %2, %cst {dimension_numbers = #tpu.dot_dimension_numbers<[1], [1], [0], [0], [0, 0, 1, 0], [], []>} : vector<1x32xbf16>, vector<16x32xbf16>, vector<1x16xf32> -> vector<1x16xf32>
    %c0_4 = arith.constant 0 : index
    %c0_5 = arith.constant 0 : index
    %5 = vector.load %arg4[%c0_4, %c0_5] : memref<1x1xf32, #tpu.memory_space<vmem>>, vector<1x1xf32>
    %6 = vector.broadcast %5 : vector<1x1xf32> to vector<1x16xf32>
    %7 = arith.addf %4, %6 : vector<1x16xf32>
    %c0_6 = arith.constant 0 : index
    %c0_7 = arith.constant 0 : index
    %c0_8 = arith.constant 0 : index
    %8 = vector.load %arg5[%c0_6, %c0_7, %c0_8] : memref<1x1x16xf32, #tpu.memory_space<vmem>>, vector<1x1x16xf32>
    %9 = vector.shape_cast %8 : vector<1x1x16xf32> to vector<1x16xf32>
    %10 = vector.shape_cast %7 : vector<1x16xf32> to vector<1x1x16xf32>
    tpu.vector_store %arg5[%c0_6, %c0_7, %c0_8], %10 {strides = array<i32>} : memref<1x1x16xf32, #tpu.memory_space<vmem>>, vector<1x1x16xf32>,
    return
  }
  func.func @transform_0(%arg0: i32, %arg1: i32) -> (i32, i32, i32) {
    %c0_i32 = arith.constant 0 : i32
    %c0_i32_0 = arith.constant 0 : i32
    return %arg0, %arg1, %c0_i32 : i32, i32, i32
  }
  func.func @transform_1(%arg0: i32, %arg1: i32) -> (i32, i32) {
    %c0_i32 = arith.constant 0 : i32
    %c0_i32_0 = arith.constant 0 : i32
    %c0_i32_1 = arith.constant 0 : i32
    return %c0_i32, %c0_i32_0 : i32, i32
  }
  func.func @transform_2(%arg0: i32, %arg1: i32) -> (i32, i32) {
    %c0_i32 = arith.constant 0 : i32
    %c0_i32_0 = arith.constant 0 : i32
    %c0_i32_1 = arith.constant 0 : i32
    return %c0_i32, %c0_i32_0 : i32, i32
  }
  func.func @transform_3(%arg0: i32, %arg1: i32) -> (i32, i32, i32) {
    %c0_i32 = arith.constant 0 : i32
    %c0_i32_0 = arith.constant 0 : i32
    return %arg0, %c0_i32, %arg1 : i32, i32, i32
  }
}

</mosaic_0001>

<llo_original>
// kernel: tpu_custom_call.1
$region0: #{tpu_custom_call.1}
  #allocation0 [shape = 'u32[]', space=smem, size = 0x4, offset = 0x4, fixed_abs, tag = 'smem constant byte address 0x4 - core index']
  #allocation1 [shape = 'u32[144,128]{1,0:T(1,128)}', space=vmem, size = 0x12000, scoped, tag = 'internal scratch']
  #allocation2 [shape = 'f32[1,1]{1,0:T(1,128)S(1)}', space=vmem, size = 0x200, scoped, tag = 'scoped memory for tpu_custom_call.1']
  %s0 = inlined_call_operand.hbm [shape: f32[2,16,32], index: 0, kind: input, shape index: {}]
  %s1 = inlined_call_operand.vmem [shape: bf16[1,32], index: 1, kind: input, shape index: {}]
  %s2 = inlined_call_operand.<no memory space> [shape: f32[1,1], index: 2, kind: input, shape index: {}]
  %s3 = inlined_call_operand.hbm [shape: f32[2,1,16], index: 3, kind: output, shape index: {}]
  %s4 = sld [smem:[#allocation0]]
  $region49: #{tpu_custom_call.1} parent=0
    _
  %s6 = ssub.s32 1, %s4
  %s7 = scalar_select 0, %s6, %s4
  %v8 = vstv %s2
  %9 = vst [vmem:[#allocation2] sm:$0x1] %v8
  $region1: #{tpu_custom_call.1} parent=0
    #allocation3 [shape = 'u8[16384]{0}', space=vmem, size = 0x4000, scoped, tag = 'input window, operand 0']
    #allocation4 [shape = 's32[2]{0}', space=sflag, size = 0x8, scoped, tag = 'scoped memory for tpu_custom_call.1']
    #allocation5 [shape = 's32[2]{0}', space=sflag, size = 0x8, scoped, tag = 'scoped memory for tpu_custom_call.1']
    #allocation6 [shape = 'u8[1024]{0}', space=vmem, size = 0x400, scoped, tag = 'output window, operand 0']
    %10 = vsyncpa [#allocation4], 0
    %s11 = scalar_lea.sflag [#allocation4], 1
    %12 = vsyncpa %s11, 0
    %13 = vsyncpa [#allocation5], 0
    %s14 = scalar_lea.sflag [#allocation5], 1
    %15 = vsyncpa %s14, 0
    loop: start=0, step=1, limit=4
    $region2: #{tpu_custom_call.1} parent=1 // loop_pre_header
      _
    $region3: #{tpu_custom_call.1} parent=1 // loop_header
      %s17 = sphi 0, %s21
      %p18 = scmp.ge.s32.totalorder %s17, 4
      %s24 = sphi 0, %s36
      %s25 = sphi 0, %s32
      %s26 = sphi 0, %s24
      %s27 = sphi 0, %s25
      %s28 = sphi 0, %s26
      %s29 = sphi 0, %s27
      %s41 = sphi 0, %s43
      %s44 = sphi 0, %s41
      %s45 = sphi 0, %s44
      %s61 = sphi 0, %s45
      %s65 = sphi 0, %s65
      %s67 = sphi 0, %s65
      %s68 = sphi 0, %s67
      %s82 = sphi 0, %s68
      %s86 = sphi 0, %s86
      %s88 = sphi 0, %s86
      %s89 = sphi 0, %s88
      %s103 = sphi 0, %s89
      %s111 = sphi 0, %s113
      %s114 = sphi 0, %s111
      %s115 = sphi 0, %s114
      %s131 = sphi 0, %s115
    $region4: #{tpu_custom_call.1} parent=1 // loop_header_branch
      %20 = sbr.rel (%p18) target = $region8
    $region5: #{tpu_custom_call.1} parent=1 // loop_body
      %s22 = ssub.s32 %s17, 1
      %s23 = ssub.s32 %s17, 2
      %s30 = sadd.s32 1, %s25
      %p31 = scmp.ge.s32.totalorder %s30, 1
      %s32 = scalar_select %p31, 0, %s30
      %s33 = sadd.s32 1, %s24
      %s34 = scalar_select %p31, %s33, %s24
      %p35 = scmp.ge.s32.totalorder %s34, 2
      %s36 = scalar_select %p35, 0, %s34
      %s37 = ssub.s32 %s24, %s36
      %s38 = ssub.s32 %s25, %s32
      %s39 = sor.u32 %s37, %s38
      %p40 = scmp.eq.s32.totalorder %s39, 0
      %s42 = sadd.s32 %s41, 1
      %s43 = scalar_select %p40, %s41, %s42
      %p46 = pneg %p40
      %p47 = scmp.eq.s32.totalorder %s17, 1
      %p48 = por %p46, %p47
      %p49 = scmp.ne.s32.totalorder %s41, %s44
      %p50 = scmp.eq.s32.totalorder %s17, 0
      %p51 = por %p49, %p50
      %p52 = scmp.ne.s32.totalorder %s41, %s44
      %p53 = scmp.eq.s32.totalorder %s22, 1
      %p54 = por %p52, %p53
      %p55 = scmp.ne.s32.totalorder %s44, %s45
      %p56 = scmp.eq.s32.totalorder %s22, 0
      %p57 = por %p55, %p56
      %p58 = scmp.ne.s32.totalorder %s44, %s45
      %p59 = scmp.eq.s32.totalorder %s23, 1
      %p60 = por %p58, %p59
      %p62 = scmp.ne.s32.totalorder %s45, %s61
      %p63 = scmp.eq.s32.totalorder %s23, 0
      %p64 = por %p62, %p63
      %s66 = sadd.s32 %s65, 1
      %p69 = scmp.eq.s32.totalorder %s17, 1
      %p70 = scmp.ne.s32.totalorder %s65, %s67
      %p71 = scmp.eq.s32.totalorder %s17, 0
      %p72 = por %p70, %p71
      %p73 = scmp.ne.s32.totalorder %s65, %s67
      %p74 = scmp.eq.s32.totalorder %s22, 1
      %p75 = por %p73, %p74
      %p76 = scmp.ne.s32.totalorder %s67, %s68
      %p77 = scmp.eq.s32.totalorder %s22, 0
      %p78 = por %p76, %p77
      %p79 = scmp.ne.s32.totalorder %s67, %s68
      %p80 = scmp.eq.s32.totalorder %s23, 1
      %p81 = por %p79, %p80
      %p83 = scmp.ne.s32.totalorder %s68, %s82
      %p84 = scmp.eq.s32.totalorder %s23, 0
      %p85 = por %p83, %p84
      %s87 = sadd.s32 %s86, 1
      %p90 = scmp.eq.s32.totalorder %s17, 1
      %p91 = scmp.ne.s32.totalorder %s86, %s88
      %p92 = scmp.eq.s32.totalorder %s17, 0
      %p93 = por %p91, %p92
      %p94 = scmp.ne.s32.totalorder %s86, %s88
      %p95 = scmp.eq.s32.totalorder %s22, 1
      %p96 = por %p94, %p95
      %p97 = scmp.ne.s32.totalorder %s88, %s89
      %p98 = scmp.eq.s32.totalorder %s22, 0
      %p99 = por %p97, %p98
      %p100 = scmp.ne.s32.totalorder %s88, %s89
      %p101 = scmp.eq.s32.totalorder %s23, 1
      %p102 = por %p100, %p101
      %p104 = scmp.ne.s32.totalorder %s89, %s103
      %p105 = scmp.eq.s32.totalorder %s23, 0
      %p106 = por %p104, %p105
      %s107 = ssub.s32 %s24, %s36
      %s108 = ssub.s32 %s25, %s32
      %s109 = sor.u32 %s107, %s108
      %p110 = scmp.eq.s32.totalorder %s109, 0
      %s112 = sadd.s32 %s111, 1
      %s113 = scalar_select %p110, %s111, %s112
      %p116 = pneg %p110
      %p117 = scmp.eq.s32.totalorder %s17, 1
      %p118 = por %p116, %p117
      %p119 = scmp.ne.s32.totalorder %s111, %s114
      %p120 = scmp.eq.s32.totalorder %s17, 0
      %p121 = por %p119, %p120
      %p122 = scmp.ne.s32.totalorder %s111, %s114
      %p123 = scmp.eq.s32.totalorder %s22, 1
      %p124 = por %p122, %p123
      %p125 = scmp.ne.s32.totalorder %s114, %s115
      %p126 = scmp.eq.s32.totalorder %s22, 0
      %p127 = por %p125, %p126
      %p128 = scmp.ne.s32.totalorder %s114, %s115
      %p129 = scmp.eq.s32.totalorder %s23, 1
      %p130 = por %p128, %p129
      %p132 = scmp.ne.s32.totalorder %s115, %s131
      %p133 = scmp.eq.s32.totalorder %s23, 0
      %p134 = por %p132, %p133
      %p135 = scmp.le.s32.totalorder 1, %s17
      %p136 = scmp.lt.s32.totalorder %s17, 3
      %p137 = pnand %p135, %p136
      %p138 = pneg %p137
      // Predicated region
      $region9: #{tpu_custom_call.1} parent=5 // pred_check
        _
      $region10: #{tpu_custom_call.1} parent=5 // pred_check_branch
        %140 = sbr.rel (%p137) target = $region12
      $region11: #{tpu_custom_call.1} parent=5 // pred_region
        %s141 = ssub.s32 %s17, 1
        // Predicated region
        $region13: #{tpu_custom_call.1} parent=11 // pred_check
          %p142 = pneg %p78
        $region14: #{tpu_custom_call.1} parent=11 // pred_check_branch
          %144 = sbr.rel (%p142) target = $region16
        $region15: #{tpu_custom_call.1} parent=11 // pred_region
          _
        $region16: #{tpu_custom_call.1} parent=11 // pred_fallthru
          _
        // Predicated region
        $region17: #{tpu_custom_call.1} parent=11 // pred_check
          %p145 = pneg %p99
        $region18: #{tpu_custom_call.1} parent=11 // pred_check_branch
          %147 = sbr.rel (%p145) target = $region20
        $region19: #{tpu_custom_call.1} parent=11 // pred_region
          _
        $region20: #{tpu_custom_call.1} parent=11 // pred_fallthru
          _
      $region12: #{tpu_custom_call.1} parent=5 // pred_fallthru
        _
      %p148 = scmp.lt.s32.totalorder %s17, 2
      // Predicated region
      $region21: #{tpu_custom_call.1} parent=5 // pred_check
        %p149 = pneg %p148
      $region22: #{tpu_custom_call.1} parent=5 // pred_check_branch
        %151 = sbr.rel (%p149) target = $region24
      $region23: #{tpu_custom_call.1} parent=5 // pred_region
        // Predicated region
        $region25: #{tpu_custom_call.1} parent=23 // pred_check
          %p152 = pneg %p51
        $region26: #{tpu_custom_call.1} parent=23 // pred_check_branch
          %154 = sbr.rel (%p152) target = $region28
        $region27: #{tpu_custom_call.1} parent=23 // pred_region
          %s155 = sand.u32 %s41, 1
          %s156 = scalar_lea.sflag [#allocation4], %s155
          %s157 = sand.u32 %s41, 1
          %s158 = smul.addr %s157, 16
          %s159 = scalar_lea.vmem [#allocation3], %s158
          %s160 = smul.u32 2, %s25
          %s162 = ssub.s32 256, 256
          %163 = vsyncadd %s156, %s162
          %s164 = smul.addr %s24, 2
          %s165 = sadd.s32 %s160, %s164
          %s166 = smul.addr %s165, 128
          %s167 = scalar_lea.hbm %s0, %s166
          %s168 = sshll.u32 %s159, 4
          %s169 = int_to_ptr.vmem [resolvable:$true] %s168
          %174 = dma.hbm_to_vmem [thread:$0]  %s167, 256, %s169, %s156, 128, 128, 8
        $region28: #{tpu_custom_call.1} parent=23 // pred_fallthru
          _
      $region24: #{tpu_custom_call.1} parent=5 // pred_fallthru
        _
      %p175 = scmp.le.s32.totalorder 1, %s17
      %p176 = scmp.lt.s32.totalorder %s17, 3
      %p177 = pnand %p175, %p176
      %p178 = pneg %p177
      // Predicated region
      $region29: #{tpu_custom_call.1} parent=5 // pred_check
        _
      $region30: #{tpu_custom_call.1} parent=5 // pred_check_branch
        %180 = sbr.rel (%p177) target = $region32
      $region31: #{tpu_custom_call.1} parent=5 // pred_region
        %s181 = ssub.s32 %s17, 1
        %s182 = sand.u32 %s44, 1
        %s183 = scalar_lea.sflag [#allocation4], %s182
        %s184 = sand.u32 %s44, 1
        %s185 = smul.addr %s184, 16
        %s186 = scalar_lea.vmem [#allocation3], %s185
        // Predicated region
        $region33: #{tpu_custom_call.1} parent=31 // pred_check
          %p187 = pneg %p57
        $region34: #{tpu_custom_call.1} parent=31 // pred_check_branch
          %189 = sbr.rel (%p187) target = $region36
        $region35: #{tpu_custom_call.1} parent=31 // pred_region
          %190 = dma.done %s183, 256
        $region36: #{tpu_custom_call.1} parent=31 // pred_fallthru
          _
        %s191 = sand.u32 %s44, 1
        %s192 = scalar_lea.sflag [#allocation4], %s191
        %s193 = sand.u32 %s44, 1
        %s194 = smul.addr %s193, 16
        %s195 = scalar_lea.vmem [#allocation3], %s194
        %p196 = pneg %p57
        %p197 = pneg %p54
        %p198 = pneg %p78
        %p199 = pneg %p75
        %p200 = pneg %p99
        %p201 = pneg %p96
        %p202 = pneg %p127
        %p203 = pneg %p124
        %s204 = sand.u32 %s114, 1
        %s205 = scalar_lea.sflag [#allocation5], %s204
        %s206 = sand.u32 %s114, 1
        %s207 = scalar_lea.vmem [#allocation6], %s206
        %s208 = smul.u32 2, %s27
        %v210 = vld [vmem:[%s186] sm:$0xff]
        %v211 = vld [vmem:[%s186 + $0x8] sm:$0xff]
        %v212 = vpack.c.bf16 %v211, %v210
        %v213 = vld [vmem:[%s1] sm:$0x1]
        %v214 = vld [vmem:[#allocation2] sm:$0x1]
        %216 = vset.pattern.permute.xlu0 0
        %217 = vperm.xlu0 %216, %v214
        %v218 = vpop.permute.xlu0 %217
        %v220 = vlaneseq
        %v221 = vshrl.u32 %v220, 7
        %v222 = vsub.s32 0, %v221
        %v223 = vrot.slane %v218, %v222
        %vm224 = vcmask 261120
        %v226 = vsel %vm224, %v213, 0
        %v229 = vsel %vm224, %v212, 0
        %231 = vmatprep.subr.bf16.mxu0 0
        %232 = vmatpush1.bf16.xpose.msra.mxu0 %v229
        %233 = vmatprep.subr.bf16.mxu0 0
        %234 = vmatpush1.bf16.xpose.msra.mxu0 0
        %235 = vmatprep.subr.bf16.mxu0 0
        %236 = vmatpush1.bf16.xpose.msra.mxu0 0
        %237 = vmatprep.subr.bf16.mxu0 0
        %238 = vmatpush1.bf16.xpose.msra.mxu0 0
        %239 = vmatprep.subr.bf16.mxu0 0
        %240 = vmatpush1.bf16.xpose.msra.mxu0 0
        %241 = vmatprep.subr.bf16.mxu0 0
        %242 = vmatpush1.bf16.xpose.msra.mxu0 0
        %243 = vmatprep.subr.bf16.mxu0 0
        %244 = vmatpush1.bf16.xpose.msra.mxu0 0
        %245 = vmatprep.subr.bf16.mxu0 0
        %246 = vmatpush1.bf16.xpose.msra.mxu0 0
        %247 = vmatprep.subr.bf16.mxu0 0
        %248 = vmatpush1.bf16.xpose.msra.mxu0 0
        %249 = vmatprep.subr.bf16.mxu0 0
        %250 = vmatpush1.bf16.xpose.msra.mxu0 0
        %251 = vmatprep.subr.bf16.mxu0 0
        %252 = vmatpush1.bf16.xpose.msra.mxu0 0
        %253 = vmatprep.subr.bf16.mxu0 0
        %254 = vmatpush1.bf16.xpose.msra.mxu0 0
        %255 = vmatprep.subr.bf16.mxu0 0
        %256 = vmatpush1.bf16.xpose.msra.mxu0 0
        %257 = vmatprep.subr.bf16.mxu0 0
        %258 = vmatpush1.bf16.xpose.msra.mxu0 0
        %259 = vmatprep.subr.bf16.mxu0 0
        %260 = vmatpush1.bf16.xpose.msra.mxu0 0
        %261 = vmatprep.subr.bf16.mxu0 0
        %262 = vmatpush1.bf16.xpose.msra.mxu0 0
        %263 = vmatprep.mubr.bf16.mxu0 0
        %264 = vmatmul.mubr.bf16.gmra.mrb[0].mxu0 %v226
        %v265 = vpop.f32.mrb[0].mxu0
        %v266 = vadd.f32 %v223, %v265
        %v267 = vpop.f32.mrb[0].mxu0
        %v268 = vpop.f32.mrb[0].mxu0
        %v269 = vpop.f32.mrb[0].mxu0
        %270 = vdwg.mxu0
        %vm271 = vcmask 122880
        %272 = vst.msk [vmem:[%s207] sm:$0x1] %vm271, %v266
        %s273 = sand.u32 %s114, 1
        %s274 = scalar_lea.sflag [#allocation5], %s273
        %s275 = sand.u32 %s114, 1
        %s276 = scalar_lea.vmem [#allocation6], %s275
        // Predicated region
        $region37: #{tpu_custom_call.1} parent=31 // pred_check
          %p277 = pneg %p124
        $region38: #{tpu_custom_call.1} parent=31 // pred_check_branch
          %279 = sbr.rel (%p277) target = $region40
        $region39: #{tpu_custom_call.1} parent=31 // pred_region
          %s281 = ssub.s32 16, 16
          %282 = vsyncadd %s274, %s281
          %s283 = sadd.s32 %s27, %s26
          %s284 = smul.addr %s283, 16
          %s285 = scalar_lea.hbm %s3, %s284
          %s287 = sshll.u32 %s276, 4
          %s288 = int_to_ptr.vmem [resolvable:$true] %s287
          %290 = dma.vmem_to_hbm [thread:$0]  %s288, 16, %s285, %s274
        $region40: #{tpu_custom_call.1} parent=31 // pred_fallthru
          _
      $region32: #{tpu_custom_call.1} parent=5 // pred_fallthru
        _
      %p291 = scmp.le.s32.totalorder 2, %s17
      // Predicated region
      $region41: #{tpu_custom_call.1} parent=5 // pred_check
        %p292 = pneg %p291
      $region42: #{tpu_custom_call.1} parent=5 // pred_check_branch
        %294 = sbr.rel (%p292) target = $region44
      $region43: #{tpu_custom_call.1} parent=5 // pred_region
        %s295 = ssub.s32 %s17, 2
        // Predicated region
        $region45: #{tpu_custom_call.1} parent=43 // pred_check
          %p296 = pneg %p130
        $region46: #{tpu_custom_call.1} parent=43 // pred_check_branch
          %298 = sbr.rel (%p296) target = $region48
        $region47: #{tpu_custom_call.1} parent=43 // pred_region
          %s299 = sand.u32 %s115, 1
          %s300 = scalar_lea.sflag [#allocation5], %s299
          %s301 = sand.u32 %s115, 1
          %s302 = scalar_lea.vmem [#allocation6], %s301
          %303 = dma.done %s300, 16
        $region48: #{tpu_custom_call.1} parent=43 // pred_fallthru
          _
      $region44: #{tpu_custom_call.1} parent=5 // pred_fallthru
        _
    $region6: #{tpu_custom_call.1} parent=1 // loop_footer
      %s21 = sadd.s32 1, %s17
    $region7: #{tpu_custom_call.1} parent=1 // loop_footer_branch
      %16 = sbr.rel target = $region3
    $region8: #{tpu_custom_call.1} parent=1 // loop_exit
      _
    %304 = vsyncpa [#allocation4], 1
    %s305 = scalar_lea.sflag [#allocation4], 1
    %306 = vsyncpa %s305, 1
    %307 = vsyncpa [#allocation5], 1
    %s308 = scalar_lea.sflag [#allocation5], 1
    %309 = vsyncpa %s308, 1

</llo_original>
